<compile_context>
chip_gen: v6e
topology: v6e:2x2x1
jax: 0.10.0
libtpu: 0.0.40
codegen_flags: <defaults>
</compile_context>

<pallas_src>
import functools

import jax
import jax.numpy as jnp
from jax.experimental import pallas as pl
from jax.experimental.pallas import tpu as pltpu

DROPOUT_P = 0.5
_GOLDEN = 0x9E3779B9


def _hash_finalize(x):
    """murmur3-style finalizer on uint32 (pure VPU integer ops)."""
    x = x ^ (x >> 16)
    x = x * jnp.uint32(0x85EBCA6B)
    x = x ^ (x >> 13)
    x = x * jnp.uint32(0xC2B2AE35)
    x = x ^ (x >> 16)
    return x


def _drop_threshold(dropout_p):
    return jnp.uint32(min(int(dropout_p * 4294967296.0), 0xFFFFFFFF))


def _keep_mask(shape, b_offset, k_offset, lq, lk_total, seed, dropout_p):
    """Deterministic Bernoulli(1 - p) keep mask from a counter-based hash.

    Keyed on global (batch, q, k) indices so the mask does not depend on how
    the kernel is tiled; identical inside the kernel and in plain JAX.
    """
    bi = jax.lax.broadcasted_iota(jnp.int32, shape, 0) + b_offset
    qi = jax.lax.broadcasted_iota(jnp.int32, shape, 1)
    ki = jax.lax.broadcasted_iota(jnp.int32, shape, 2) + k_offset
    x = ((bi * lq + qi) * lk_total + ki).astype(jnp.uint32)
    x = x + jnp.uint32(seed & 0xFFFFFFFF) * jnp.uint32(_GOLDEN)
    return _hash_finalize(x) >= _drop_threshold(dropout_p)


# ----------------------------------------------------------------------------
# Fast path: the whole Lk fits in one kv block -> no online softmax machinery.
# Grid = (batch blocks,).
# ----------------------------------------------------------------------------
def _attn_dropout_single_kernel(q_ref, kT_ref, v_ref, o_ref,
                                *, scale, seed, dropout_p, lq, lk_total):
    b_blk = pl.program_id(0)
    bt = q_ref.shape[0]

    # Fold scale into q (Lq*D mults), then cast matmul operands to bf16 for
    # native-rate MXU; accumulation stays f32.
    q = (q_ref[...].astype(jnp.float32) * scale).astype(jnp.bfloat16)
    kT = kT_ref[...].astype(jnp.bfloat16)                    # (bt, D, Lk)
    s = jnp.einsum('bqd,bdk->bqk', q, kT,
                   preferred_element_type=jnp.float32)       # (bt, Lq, Lk)

    m = jnp.max(s, axis=-1, keepdims=True)
    e = jnp.exp(s - m)
    l = jnp.sum(e, axis=-1, keepdims=True)

    keep = _keep_mask(s.shape, b_blk * bt, 0, lq, lk_total, seed, dropout_p)
    e_masked = jnp.where(keep, e, 0.0)

    pv = jnp.einsum('bqk,bkd->bqd',
                    e_masked.astype(jnp.bfloat16),
                    v_ref[...].astype(jnp.bfloat16),
                    preferred_element_type=jnp.float32)      # (bt, Lq, Dv)

    inv_keep = 1.0 / (1.0 - dropout_p)
    o_ref[...] = (pv * (pl.reciprocal(l, approx=True) * inv_keep)
                  ).astype(o_ref.dtype)


# ----------------------------------------------------------------------------
# General path: flash-style online softmax over kv blocks.
# Grid = (batch blocks, kv blocks).
# ----------------------------------------------------------------------------
def _attn_dropout_flash_kernel(q_ref, kT_ref, v_ref, o_ref,
                               m_ref, l_ref, acc_ref, base_ref,
                               *, scale, seed, dropout_p, kv_block, lq,
                               lk_total):
    b_blk = pl.program_id(0)
    kv = pl.program_id(1)
    bt = q_ref.shape[0]

    @pl.when(kv == 0)
    def _init():
        m_ref[...] = jnp.full(m_ref.shape, -jnp.inf, dtype=m_ref.dtype)
        l_ref[...] = jnp.zeros(l_ref.shape, dtype=l_ref.dtype)
        acc_ref[...] = jnp.zeros(acc_ref.shape, dtype=acc_ref.dtype)
        # Hoist the kv-invariant part of the dropout hash (per batch block).
        bi = jax.lax.broadcasted_iota(jnp.int32, base_ref.shape, 0) + b_blk * bt
        qi = jax.lax.broadcasted_iota(jnp.int32, base_ref.shape, 1)
        base = ((bi * lq + qi) * lk_total).astype(jnp.uint32)
        base_ref[...] = base + jnp.uint32(seed & 0xFFFFFFFF) * jnp.uint32(_GOLDEN)

    q = (q_ref[...].astype(jnp.float32) * scale).astype(jnp.bfloat16)
    kT = kT_ref[...].astype(jnp.bfloat16)                    # (bt, D, Tk)
    s = jnp.einsum('bqd,bdk->bqk', q, kT,
                   preferred_element_type=jnp.float32)       # (bt, Lq, Tk)

    m_prev = m_ref[...]
    m_new = jnp.maximum(m_prev, jnp.max(s, axis=-1, keepdims=True))
    alpha = jnp.exp(m_prev - m_new)
    e = jnp.exp(s - m_new)

    # Softmax denominator accumulates the *unmasked* e (normalization and the
    # 1/(1-p) rescale are deferred to the small (Lq, Dv) finalize).
    l_ref[...] = alpha * l_ref[...] + jnp.sum(e, axis=-1, keepdims=True)

    # Per-step dropout mask: base (hoisted) + key index, then finalizer.
    ki = (jax.lax.broadcasted_iota(jnp.int32, s.shape, 2)
          + kv * kv_block).astype(jnp.uint32)
    keep = _hash_finalize(base_ref[...] + ki) >= _drop_threshold(dropout_p)
    e_masked = jnp.where(keep, e, 0.0)

    acc_ref[...] = alpha * acc_ref[...] + jnp.einsum(
        'bqk,bkd->bqd',
        e_masked.astype(jnp.bfloat16),
        v_ref[...].astype(jnp.bfloat16),
        preferred_element_type=jnp.float32)
    m_ref[...] = m_new

    @pl.when(kv == pl.num_programs(1) - 1)
    def _finalize():
        inv_keep = 1.0 / (1.0 - dropout_p)
        o_ref[...] = (acc_ref[...] *
                      (pl.reciprocal(l_ref[...], approx=True) * inv_keep)
                      ).astype(o_ref.dtype)


# ----------------------------------------------------------------------------
# Tiling heuristics.
# ----------------------------------------------------------------------------
def _block_bytes(bt, lq, tk, d, dv):
    itemsize = 4
    io = 2 * bt * (lq * d + d * tk + tk * dv + lq * dv) * itemsize  # dbl-buffered
    scratch = bt * lq * (dv + 3) * itemsize
    inter = 8 * bt * lq * tk * itemsize   # scores / e / mask headroom
    return io + scratch + inter


def _pick_kv_block(Lk, cap=2048):
    # Full-extent block is always layout-legal; otherwise the last dim of the
    # transposed k block must be a multiple of 128.
    if Lk <= cap:
        return Lk
    best = None
    for cand in range(128, cap + 1, 128):
        if Lk % cand == 0:
            best = cand
    return best if best is not None else Lk


def _pick_batch_block(B, lq, tk, d, dv, budget=32 << 20):
    # Largest divisor of B whose working set fits the VMEM budget (bt = B for
    # small problems -> single grid step, no fragmentation overhead).
    best = 1
    for cand in range(1, B + 1):
        if B % cand == 0 and _block_bytes(cand, lq, tk, d, dv) <= budget:
            best = cand
    return best


def _vmem_limit_bytes(bt, lq, tk, d, dv):
    est = _block_bytes(bt, lq, tk, d, dv) + (4 << 20)
    # Cap at 48 MiB: leaves headroom below v7x's 64 MiB physical VMEM per TC.
    return int(min(max(est, 16 << 20), 48 << 20))


# ----------------------------------------------------------------------------
# Wrapper.
# ----------------------------------------------------------------------------
def model_forward(q, k, v, inv_scale_factor, is_training=True, seed=0,
                  *, batch_block=None, kv_block=None):
    """JAX wrapper reproducing Model.forward semantics (dropout always on)."""
    del is_training   # F.dropout default training=True in the reference
    B, Lq, D = q.shape
    Bk, Lk, Dk = k.shape
    Bv, Lkv, Dv = v.shape
    assert B == Bk == Bv and D == Dk and Lk == Lkv

    tk = kv_block if kv_block is not None else _pick_kv_block(Lk)
    assert Lk % tk == 0
    bt = batch_block if batch_block is not None else _pick_batch_block(
        B, Lq, tk, D, Dv)
    assert B % bt == 0

    scale = 1.0 / float(inv_scale_factor)
    # Present k pre-transposed (B, D, Lk): lane-dense along Lk, MXU-native RHS.
    kT = jnp.swapaxes(k, -1, -2)

    n_kv = Lk // tk
    vmem_limit = _vmem_limit_bytes(bt, Lq, tk, D, Dv)

    if n_kv == 1:
        kernel = functools.partial(
            _attn_dropout_single_kernel,
            scale=scale, seed=int(seed), dropout_p=DROPOUT_P,
            lq=Lq, lk_total=Lk)
        grid_spec = pltpu.PrefetchScalarGridSpec(
            num_scalar_prefetch=0,
            grid=(B // bt,),
            in_specs=[
                pl.BlockSpec((bt, Lq, D), lambda b: (b, 0, 0)),
                pl.BlockSpec((bt, D, Lk), lambda b: (b, 0, 0)),
                pl.BlockSpec((bt, Lk, Dv), lambda b: (b, 0, 0)),
            ],
            out_specs=pl.BlockSpec((bt, Lq, Dv), lambda b: (b, 0, 0)),
        )
        dim_sem = ("parallel",)
    else:
        kernel = functools.partial(
            _attn_dropout_flash_kernel,
            scale=scale, seed=int(seed), dropout_p=DROPOUT_P,
            kv_block=tk, lq=Lq, lk_total=Lk)
        grid_spec = pltpu.PrefetchScalarGridSpec(
            num_scalar_prefetch=0,
            grid=(B // bt, n_kv),
            in_specs=[
                pl.BlockSpec((bt, Lq, D), lambda b, kv: (b, 0, 0)),
                pl.BlockSpec((bt, D, tk), lambda b, kv: (b, 0, kv)),
                pl.BlockSpec((bt, tk, Dv), lambda b, kv: (b, kv, 0)),
            ],
            out_specs=pl.BlockSpec((bt, Lq, Dv), lambda b, kv: (b, 0, 0)),
            scratch_shapes=[
                pltpu.VMEM((bt, Lq, 1), jnp.float32),    # running max m
                pltpu.VMEM((bt, Lq, 1), jnp.float32),    # running denom l
                pltpu.VMEM((bt, Lq, Dv), jnp.float32),   # output accumulator
                pltpu.VMEM((bt, Lq, 1), jnp.uint32),     # hoisted hash base
            ],
        )
        dim_sem = ("parallel", "arbitrary")

    return pl.pallas_call(
        kernel,
        out_shape=jax.ShapeDtypeStruct((B, Lq, Dv), q.dtype),
        grid_spec=grid_spec,
        compiler_params=pltpu.CompilerParams(
            dimension_semantics=dim_sem,
            vmem_limit_bytes=vmem_limit,
        ),
    )(q, kT, v)


def _reference(q, k, v, inv_scale_factor, seed):
    """Pure-JAX f32 reference with the same deterministic dropout mask."""
    B, Lq, _ = q.shape
    Lk = k.shape[1]
    s = jnp.einsum('bqd,bkd->bqk', q, k) / inv_scale_factor
    p = jax.nn.softmax(s, axis=-1)
    keep = _keep_mask((B, Lq, Lk), 0, 0, Lq, Lk, int(seed), DROPOUT_P)
    p = jnp.where(keep, p / (1.0 - DROPOUT_P), 0.0)
    return jnp.einsum('bqk,bkd->bqd', p, v)


if __name__ == "__main__":
    key = jax.random.PRNGKey(0)
    kq, kk, kv_, kq2, kk2, kv2 = jax.random.split(key, 6)

    inv_scale_factor = 1.0  # matches the reference global

    # Small, mutually consistent shapes (the reference q/k/v literals are
    # shape-incompatible for the matmul, so consistent small shapes are used).
    # Dv = 128 keeps the output block lane-dense (unmasked vector stores).
    # Tolerances are wider than the f32 version because the matmul operands
    # are bf16 (accumulation f32); algorithmic errors would be O(1).
    RTOL, ATOL = 8e-2, 8e-2

    # --- Case 1: default heuristics -> single-kv fast path, bt = B.
    B, Lq, Lk, D, Dv = 2, 8, 128, 32, 128
    q = jax.random.normal(kq, (B, Lq, D), dtype=jnp.float32)
    k = jax.random.normal(kk, (B, Lk, D), dtype=jnp.float32)
    v = jax.random.normal(kv_, (B, Lk, Dv), dtype=jnp.float32)

    out = jax.block_until_ready(
        model_forward(q, k, v, inv_scale_factor, is_training=True, seed=0))
    assert out.shape == (B, Lq, Dv)
    ref = _reference(q, k, v, inv_scale_factor, seed=0)
    err = float(jnp.max(jnp.abs(out - ref)))
    assert jnp.allclose(out, ref, rtol=RTOL, atol=ATOL), (
        "fast path max abs err = %f" % err)

    # --- Case 2: force the flash path (multiple batch + kv blocks).
    B2, Lk2 = 2, 256
    q2 = jax.random.normal(kq2, (B2, Lq, D), dtype=jnp.float32)
    k2 = jax.random.normal(kk2, (B2, Lk2, D), dtype=jnp.float32)
    v2 = jax.random.normal(kv2, (B2, Lk2, Dv), dtype=jnp.float32)

    out2 = jax.block_until_ready(
        model_forward(q2, k2, v2, inv_scale_factor, is_training=True, seed=1,
                      batch_block=1, kv_block=128))
    assert out2.shape == (B2, Lq, Dv)
    ref2 = _reference(q2, k2, v2, inv_scale_factor, seed=1)
    err2 = float(jnp.max(jnp.abs(out2 - ref2)))
    assert jnp.allclose(out2, ref2, rtol=RTOL, atol=ATOL), (
        "flash path max abs err = %f" % err2)

    print("KERNEL_OK")
</pallas_src>

<mosaic_0001>
module attributes {stable_mosaic.version = 11 : i64} {
  func.func @_attn_dropout_single_kernel(%arg0: i32, %arg1: memref<2x8x32xf32, #tpu.memory_space<vmem>>, %arg2: memref<2x32x128xf32, #tpu.memory_space<vmem>>, %arg3: memref<2x128x128xf32, #tpu.memory_space<vmem>>, %arg4: memref<2x8x128xf32, #tpu.memory_space<vmem>>) attributes {dimension_semantics = [#tpu.dimension_semantics<parallel>], iteration_bounds = array<i64: 1>, scalar_prefetch = 0 : i64, scratch_operands = 0 : i64, tpu.core_type = #tpu.core_type<tc>, window_params = [{transform_indices = @transform_0, window_bounds = array<i64: 2, 8, 32>}, {transform_indices = @transform_1, window_bounds = array<i64: 2, 32, 128>}, {transform_indices = @transform_2, window_bounds = array<i64: 2, 128, 128>}, {transform_indices = @transform_3, window_bounds = array<i64: 2, 8, 128>}]} {
    %c0 = arith.constant 0 : index
    %c0_0 = arith.constant 0 : index
    %c0_1 = arith.constant 0 : index
    %0 = vector.load %arg1[%c0, %c0_0, %c0_1] : memref<2x8x32xf32, #tpu.memory_space<vmem>>, vector<2x8x32xf32>
    %cst = arith.constant 1.000000e+00 : f32
    %1 = vector.broadcast %cst : f32 to vector<2x8x32xf32>
    %2 = arith.mulf %0, %1 : vector<2x8x32xf32>
    %3 = arith.truncf %2 : vector<2x8x32xf32> to vector<2x8x32xbf16>
    %c0_2 = arith.constant 0 : index
    %c0_3 = arith.constant 0 : index
    %c0_4 = arith.constant 0 : index
    %4 = vector.load %arg2[%c0_2, %c0_3, %c0_4] : memref<2x32x128xf32, #tpu.memory_space<vmem>>, vector<2x32x128xf32>
    %5 = arith.truncf %4 : vector<2x32x128xf32> to vector<2x32x128xbf16>
    "tpu.trace_start"() <{level = 10 : i32, message = "bqd,bdk->bqk"}> : () -> ()
    %cst_5 = arith.constant dense<0.000000e+00> : vector<2x8x128xf32>
    %6 = tpu.matmul %3, %5, %cst_5 {dimension_numbers = #tpu.dot_dimension_numbers<[2], [1], [1], [2], [0, 0, 0, 1, 1, 2], [0], [0]>} : vector<2x8x32xbf16>, vector<2x32x128xbf16>, vector<2x8x128xf32> -> vector<2x8x128xf32>
    "tpu.trace_stop"() : () -> ()
    %cst_6 = arith.constant dense<0xFF800000> : vector<2x8xf32>
    %7 = vector.multi_reduction <maximumf>, %6, %cst_6 [2] : vector<2x8x128xf32> to vector<2x8xf32>
    %8 = vector.shape_cast %7 : vector<2x8xf32> to vector<2x8x1xf32>
    %9 = vector.broadcast %8 : vector<2x8x1xf32> to vector<2x8x128xf32>
    %10 = arith.subf %6, %9 : vector<2x8x128xf32>
    %11 = math.exp %10 : vector<2x8x128xf32>
    %cst_7 = arith.constant dense<0.000000e+00> : vector<2x8xf32>
    %12 = vector.multi_reduction <add>, %11, %cst_7 [2] : vector<2x8x128xf32> to vector<2x8xf32>
    %13 = vector.shape_cast %12 : vector<2x8xf32> to vector<2x8x1xf32>
    %c2_i32 = arith.constant 2 : i32
    %14 = arith.muli %arg0, %c2_i32 : i32
    %15 = tpu.iota {dimensions = array<i32: 0>} : vector<2x8x128xi32>
    %16 = vector.broadcast %14 : i32 to vector<2x8x128xi32>
    %17 = arith.addi %15, %16 : vector<2x8x128xi32>
    %18 = tpu.iota {dimensions = array<i32: 1>} : vector<2x8x128xi32>
    %19 = tpu.iota {dimensions = array<i32: 2>} : vector<2x8x128xi32>
    %c0_i32 = arith.constant 0 : i32
    %20 = vector.broadcast %c0_i32 : i32 to vector<2x8x128xi32>
    %21 = arith.addi %19, %20 : vector<2x8x128xi32>
    %c8_i32 = arith.constant 8 : i32
    %22 = vector.broadcast %c8_i32 : i32 to vector<2x8x128xi32>
    %23 = arith.muli %17, %22 : vector<2x8x128xi32>
    %24 = arith.addi %23, %18 : vector<2x8x128xi32>
    %c128_i32 = arith.constant 128 : i32
    %25 = vector.broadcast %c128_i32 : i32 to vector<2x8x128xi32>
    %26 = arith.muli %24, %25 : vector<2x8x128xi32>
    %27 = arith.addi %26, %21 : vector<2x8x128xi32>
    %c0_i32_8 = arith.constant 0 : i32
    %c-1640531527_i32 = arith.constant -1640531527 : i32
    %28 = arith.muli %c0_i32_8, %c-1640531527_i32 : i32
    %29 = vector.broadcast %28 : i32 to vector<2x8x128xi32>
    %30 = arith.addi %27, %29 : vector<2x8x128xi32>
    %c16_i32 = arith.constant 16 : i32
    %31 = vector.broadcast %c16_i32 : i32 to vector<2x8x128xi32>
    %32 = arith.shrui %30, %31 : vector<2x8x128xi32>
    %33 = arith.xori %30, %32 : vector<2x8x128xi32>
    %c-2048144789_i32 = arith.constant -2048144789 : i32
    %34 = vector.broadcast %c-2048144789_i32 : i32 to vector<2x8x128xi32>
    %35 = arith.muli %33, %34 : vector<2x8x128xi32>
    %c13_i32 = arith.constant 13 : i32
    %36 = vector.broadcast %c13_i32 : i32 to vector<2x8x128xi32>
    %37 = arith.shrui %35, %36 : vector<2x8x128xi32>
    %38 = arith.xori %35, %37 : vector<2x8x128xi32>
    %c-1028477387_i32 = arith.constant -1028477387 : i32
    %39 = vector.broadcast %c-1028477387_i32 : i32 to vector<2x8x128xi32>
    %40 = arith.muli %38, %39 : vector<2x8x128xi32>
    %c16_i32_9 = arith.constant 16 : i32
    %41 = vector.broadcast %c16_i32_9 : i32 to vector<2x8x128xi32>
    %42 = arith.shrui %40, %41 : vector<2x8x128xi32>
    %43 = arith.xori %40, %42 : vector<2x8x128xi32>
    %c-2147483648_i32 = arith.constant -2147483648 : i32
    %44 = vector.broadcast %c-2147483648_i32 : i32 to vector<2x8x128xi32>
    %45 = arith.cmpi uge, %43, %44 : vector<2x8x128xi32>
    %cst_10 = arith.constant 0.000000e+00 : f32
    %46 = vector.broadcast %cst_10 : f32 to vector<2x8x128xf32>
    %47 = arith.select %45, %11, %46 : vector<2x8x128xi1>, vector<2x8x128xf32>
    %48 = arith.truncf %47 : vector<2x8x128xf32> to vector<2x8x128xbf16>
    %c0_11 = arith.constant 0 : index
    %c0_12 = arith.constant 0 : index
    %c0_13 = arith.constant 0 : index
    %49 = vector.load %arg3[%c0_11, %c0_12, %c0_13] : memref<2x128x128xf32, #tpu.memory_space<vmem>>, vector<2x128x128xf32>
    %50 = arith.truncf %49 : vector<2x128x128xf32> to vector<2x128x128xbf16>
    "tpu.trace_start"() <{level = 10 : i32, message = "bqk,bkd->bqd"}> : () -> ()
    %cst_14 = arith.constant dense<0.000000e+00> : vector<2x8x128xf32>
    %51 = tpu.matmul %48, %50, %cst_14 {dimension_numbers = #tpu.dot_dimension_numbers<[2], [1], [1], [2], [0, 0, 0, 1, 1, 2], [0], [0]>} : vector<2x8x128xbf16>, vector<2x128x128xbf16>, vector<2x8x128xf32> -> vector<2x8x128xf32>
    "tpu.trace_stop"() : () -> ()
    %52 = tpu.reciprocal %13 {approx = true} : vector<2x8x1xf32> -> vector<2x8x1xf32>
    %cst_15 = arith.constant 2.000000e+00 : f32
    %53 = vector.broadcast %cst_15 : f32 to vector<2x8x1xf32>
    %54 = arith.mulf %52, %53 : vector<2x8x1xf32>
    %55 = vector.broadcast %54 : vector<2x8x1xf32> to vector<2x8x128xf32>
    %56 = arith.mulf %51, %55 : vector<2x8x128xf32>
    %c0_16 = arith.constant 0 : index
    %c0_17 = arith.constant 0 : index
    %c0_18 = arith.constant 0 : index
    %57 = vector.load %arg4[%c0_16, %c0_17, %c0_18] : memref<2x8x128xf32, #tpu.memory_space<vmem>>, vector<2x8x128xf32>
    tpu.vector_store %arg4[%c0_16, %c0_17, %c0_18], %56 {strides = array<i32>} : memref<2x8x128xf32, #tpu.memory_space<vmem>>, vector<2x8x128xf32>,
    return
  }
  func.func @transform_0(%arg0: i32) -> (i32, i32, i32) {
    %c0_i32 = arith.constant 0 : i32
    %c0_i32_0 = arith.constant 0 : i32
    %c0_i32_1 = arith.constant 0 : i32
    return %arg0, %c0_i32, %c0_i32_0 : i32, i32, i32
  }
  func.func @transform_1(%arg0: i32) -> (i32, i32, i32) {
    %c0_i32 = arith.constant 0 : i32
    %c0_i32_0 = arith.constant 0 : i32
    %c0_i32_1 = arith.constant 0 : i32
    return %arg0, %c0_i32, %c0_i32_0 : i32, i32, i32
  }
  func.func @transform_2(%arg0: i32) -> (i32, i32, i32) {
    %c0_i32 = arith.constant 0 : i32
    %c0_i32_0 = arith.constant 0 : i32
    %c0_i32_1 = arith.constant 0 : i32
    return %arg0, %c0_i32, %c0_i32_0 : i32, i32, i32
  }
  func.func @transform_3(%arg0: i32) -> (i32, i32, i32) {
    %c0_i32 = arith.constant 0 : i32
    %c0_i32_0 = arith.constant 0 : i32
    %c0_i32_1 = arith.constant 0 : i32
    return %arg0, %c0_i32, %c0_i32_0 : i32, i32, i32
  }
}

</mosaic_0001>

<llo_original>
// kernel: tpu_custom_call.1
$region0: #{tpu_custom_call.1}
  #allocation0 [shape = 'u32[]', space=smem, size = 0x4, offset = 0x4, fixed_abs, tag = 'smem constant byte address 0x4 - core index']
  #allocation1 [shape = 'u32[144,128]{1,0:T(1,128)}', space=vmem, size = 0x12000, scoped, tag = 'internal scratch']
  %s0 = inlined_call_operand.hbm [shape: f32[2,8,32], index: 0, kind: input, shape index: {}]
  %s1 = inlined_call_operand.hbm [shape: f32[2,32,128], index: 1, kind: input, shape index: {}]
  %s2 = inlined_call_operand.hbm [shape: f32[2,128,128], index: 2, kind: input, shape index: {}]
  %s3 = inlined_call_operand.hbm [shape: f32[2,8,128], index: 3, kind: output, shape index: {}]
  %s4 = sld [smem:[#allocation0]]
  $region34: #{tpu_custom_call.1} parent=0
    _
  %s6 = ssub.s32 1, %s4
  %s7 = scalar_select 0, %s6, %s4
  $region1: #{tpu_custom_call.1} parent=0
    #allocation2 [shape = 'u8[8192]{0}', space=vmem, size = 0x2000, scoped, tag = 'input window, operand 0, single buffered']
    #allocation3 [shape = 's32[1]{0}', space=sflag, size = 0x4, scoped, tag = 'scoped memory for tpu_custom_call.1']
    #allocation4 [shape = 's32[1]{0}', space=sflag, size = 0x4, scoped, tag = 'scoped memory for tpu_custom_call.1']
    #allocation5 [shape = 'u8[32768]{0}', space=vmem, size = 0x8000, scoped, tag = 'input window, operand 1, single buffered']
    #allocation6 [shape = 's32[1]{0}', space=sflag, size = 0x4, scoped, tag = 'scoped memory for tpu_custom_call.1']
    #allocation7 [shape = 'u8[131072]{0}', space=vmem, size = 0x20000, scoped, tag = 'input window, operand 2, single buffered']
    #allocation8 [shape = 'u8[8192]{0}', space=vmem, size = 0x2000, scoped, tag = 'output window, operand 0, single buffered']
    %8 = vsyncpa [#allocation3], 0
    %9 = vsyncpa [#allocation6], 0
    %10 = vsyncpa [#allocation4], 0
    // Predicated region
    $region2: #{tpu_custom_call.1} parent=1 // pred_check
      _
    $region3: #{tpu_custom_call.1} parent=1 // pred_check_branch
      %12 = sbr.rel (0) target = $region5
    $region4: #{tpu_custom_call.1} parent=1 // pred_region
      %s14 = ssub.s32 256, 256
      %15 = vsyncadd [#allocation3], %s14
      %s16 = sshll.u32 [#allocation2], 4
      %s17 = int_to_ptr.vmem [resolvable:$true] %s16
      %22 = dma.hbm_to_vmem [thread:$0]  %s0, 256, %s17, [#allocation3], 128, 128, 8
    $region5: #{tpu_custom_call.1} parent=1 // pred_fallthru
      _
    // Predicated region
    $region6: #{tpu_custom_call.1} parent=1 // pred_check
      _
    $region7: #{tpu_custom_call.1} parent=1 // pred_check_branch
      %24 = sbr.rel (0) target = $region9
    $region8: #{tpu_custom_call.1} parent=1 // pred_region
      %s26 = ssub.s32 1024, 1024
      %27 = vsyncadd [#allocation6], %s26
      %s28 = sshll.u32 [#allocation5], 4
      %s29 = int_to_ptr.vmem [resolvable:$true] %s28
      %34 = dma.hbm_to_vmem [thread:$0]  %s1, 1024, %s29, [#allocation6], 128, 128, 8
    $region9: #{tpu_custom_call.1} parent=1 // pred_fallthru
      _
    // Predicated region
    $region10: #{tpu_custom_call.1} parent=1 // pred_check
      _
    $region11: #{tpu_custom_call.1} parent=1 // pred_check_branch
      %36 = sbr.rel (0) target = $region13
    $region12: #{tpu_custom_call.1} parent=1 // pred_region
      %s38 = ssub.s32 4096, 4096
      %39 = vsyncadd [#allocation6], %s38
      %s40 = sshll.u32 [#allocation7], 4
      %s41 = int_to_ptr.vmem [resolvable:$true] %s40
      %46 = dma.hbm_to_vmem [thread:$0]  %s2, 4096, %s41, [#allocation6], 128, 128, 8
    $region13: #{tpu_custom_call.1} parent=1 // pred_fallthru
      _
    // Predicated region
    $region14: #{tpu_custom_call.1} parent=1 // pred_check
      _
    $region15: #{tpu_custom_call.1} parent=1 // pred_check_branch
      %48 = sbr.rel (0) target = $region17
    $region16: #{tpu_custom_call.1} parent=1 // pred_region
      %49 = dma.done [#allocation3], 256
    $region17: #{tpu_custom_call.1} parent=1 // pred_fallthru
      _
    // Predicated region
    $region18: #{tpu_custom_call.1} parent=1 // pred_check
      _
    $region19: #{tpu_custom_call.1} parent=1 // pred_check_branch
      %51 = sbr.rel (0) target = $region21
    $region20: #{tpu_custom_call.1} parent=1 // pred_region
      %52 = dma.done [#allocation6], 1024
    $region21: #{tpu_custom_call.1} parent=1 // pred_fallthru
      _
    // Predicated region
    $region22: #{tpu_custom_call.1} parent=1 // pred_check
      _
    $region23: #{tpu_custom_call.1} parent=1 // pred_check_branch
      %54 = sbr.rel (0) target = $region25
    $region24: #{tpu_custom_call.1} parent=1 // pred_region
      %55 = dma.done [#allocation6], 4096
    $region25: #{tpu_custom_call.1} parent=1 // pred_fallthru
      _
    %v57 = vld [vmem:[#allocation2] sm:$0xff]
    %v58 = vld [vmem:[#allocation2 + $0x8] sm:$0xff]
    %v59 = vpack.c.bf16 %v57, %v57
    %v60 = vpack.c.bf16 %v58, %v58
    %v61 = vld [vmem:[#allocation5] sm:$0xff]
    %v62 = vld [vmem:[#allocation5 + $0x8] sm:$0xff]
    %v63 = vld [vmem:[#allocation5 + $0x10] sm:$0xff]
    %v64 = vld [vmem:[#allocation5 + $0x18] sm:$0xff]
    %v65 = vld [vmem:[#allocation5 + $0x20] sm:$0xff]
    %v66 = vld [vmem:[#allocation5 + $0x28] sm:$0xff]
    %v67 = vld [vmem:[#allocation5 + $0x30] sm:$0xff]
    %v68 = vld [vmem:[#allocation5 + $0x38] sm:$0xff]
    %v69 = vpack.c.bf16 %v62, %v61
    %v70 = vpack.c.bf16 %v64, %v63
    %v71 = vpack.c.bf16 %v66, %v65
    %v72 = vpack.c.bf16 %v68, %v67
    %vm73 = vcmask 261120
    %v75 = vsel %vm73, %v59, 0
    %77 = vmatprep.subr.bf16.mxu0 0
    %78 = vmatpush1.bf16.msra.mxu0 0
    %79 = vmatprep.subr.bf16.mxu0 0
    %80 = vmatpush1.bf16.msra.mxu0 0
    %81 = vmatprep.subr.bf16.mxu0 0
    %82 = vmatpush1.bf16.msra.mxu0 0
    %83 = vmatprep.subr.bf16.mxu0 0
    %84 = vmatpush1.bf16.msra.mxu0 0
    %85 = vmatprep.subr.bf16.mxu0 0
    %86 = vmatpush1.bf16.msra.mxu0 0
    %87 = vmatprep.subr.bf16.mxu0 0
    %88 = vmatpush1.bf16.msra.mxu0 0
    %89 = vmatprep.subr.bf16.mxu0 0
    %90 = vmatpush1.bf16.msra.mxu0 %v70
    %91 = vmatprep.subr.bf16.mxu0 0
    %92 = vmatpush1.bf16.msra.mxu0 %v69
    %93 = vmatprep.subr.bf16.mxu0 0
    %94 = vmatpush2.bf16.msra.mxu0 0
    %95 = vmatprep.subr.bf16.mxu0 0
    %96 = vmatpush2.bf16.msra.mxu0 0
    %97 = vmatprep.subr.bf16.mxu0 0
    %98 = vmatpush2.bf16.msra.mxu0 0
    %99 = vmatprep.subr.bf16.mxu0 0
    %100 = vmatpush2.bf16.msra.mxu0 0
    %101 = vmatprep.subr.bf16.mxu0 0
    %102 = vmatpush2.bf16.msra.mxu0 0
    %103 = vmatprep.subr.bf16.mxu0 0
    %104 = vmatpush2.bf16.msra.mxu0 0
    %105 = vmatprep.subr.bf16.mxu0 0
    %106 = vmatpush2.bf16.msra.mxu0 0
    %107 = vmatprep.subr.bf16.mxu0 0
    %108 = vmatpush2.bf16.msra.mxu0 0
    %109 = vmatprep.mubr.bf16.mxu0 0
    %110 = vmatmul.mubr.bf16.gmra.mxu0 %v75
    %v111 = vpop.f32.mrf.mxu0
    %v112 = vadd.f32 0.0, %v111
    %v113 = vpop.f32.mrf.mxu0
    %v114 = vpop.f32.mrf.mxu0
    %v115 = vpop.f32.mrf.mxu0
    %116 = vdwg.mxu0
    %v118 = vsel %vm73, %v60, 0
    %120 = vmatprep.subr.bf16.mxu0 0
    %121 = vmatpush1.bf16.msra.mxu0 0
    %122 = vmatprep.subr.bf16.mxu0 0
    %123 = vmatpush1.bf16.msra.mxu0 0
    %124 = vmatprep.subr.bf16.mxu0 0
    %125 = vmatpush1.bf16.msra.mxu0 0
    %126 = vmatprep.subr.bf16.mxu0 0
    %127 = vmatpush1.bf16.msra.mxu0 0
    %128 = vmatprep.subr.bf16.mxu0 0
    %129 = vmatpush1.bf16.msra.mxu0 0
    %130 = vmatprep.subr.bf16.mxu0 0
    %131 = vmatpush1.bf16.msra.mxu0 0
    %132 = vmatprep.subr.bf16.mxu0 0
    %133 = vmatpush1.bf16.msra.mxu0 %v72
    %134 = vmatprep.subr.bf16.mxu0 0
    %135 = vmatpush1.bf16.msra.mxu0 %v71
    %136 = vmatprep.subr.bf16.mxu0 0
    %137 = vmatpush2.bf16.msra.mxu0 0
    %138 = vmatprep.subr.bf16.mxu0 0
    %139 = vmatpush2.bf16.msra.mxu0 0
    %140 = vmatprep.subr.bf16.mxu0 0
    %141 = vmatpush2.bf16.msra.mxu0 0
    %142 = vmatprep.subr.bf16.mxu0 0
    %143 = vmatpush2.bf16.msra.mxu0 0
    %144 = vmatprep.subr.bf16.mxu0 0
    %145 = vmatpush2.bf16.msra.mxu0 0
    %146 = vmatprep.subr.bf16.mxu0 0
    %147 = vmatpush2.bf16.msra.mxu0 0
    %148 = vmatprep.subr.bf16.mxu0 0
    %149 = vmatpush2.bf16.msra.mxu0 0
    %150 = vmatprep.subr.bf16.mxu0 0
    %151 = vmatpush2.bf16.msra.mxu0 0
    %152 = vmatprep.mubr.bf16.mxu0 0
    %153 = vmatmul.mubr.bf16.gmra.mxu0 %v118
    %v154 = vpop.f32.mrf.mxu0
    %v155 = vadd.f32 0.0, %v154
    %v156 = vpop.f32.mrf.mxu0
    %v157 = vpop.f32.mrf.mxu0
    %v158 = vpop.f32.mrf.mxu0
    %159 = vdwg.mxu0
    %160 = vmax.xlane.f32.xlu0 %v112
    %v161 = vpop.xlane.xlu0 %160
    %162 = vmax.xlane.f32.xlu0 %v155
    %v163 = vpop.xlane.xlu0 %162
    %v164 = vsub.f32 %v112, %v161
    %v165 = vsub.f32 %v155, %v163
    %v166 = vmul.f32 %v164, 1.442695
    %v167 = vpow.pop %v166
    %v168 = vmul.f32 %v165, 1.442695
    %v169 = vpow.pop %v168
    %170 = vadd.xlane.f32.xlu0 %v167
    %v171 = vpop.xlane.xlu0 %170
    %172 = vadd.xlane.f32.xlu0 %v169
    %v173 = vpop.xlane.xlu0 %172
    %s174 = smul.u32 0, 2
    %v175 = vstv %s174
    %v176 = vadd.s32 %v175, 1
    %v177 = vlaneseq
    %v178 = vshrl.u32 %v177, 7
    %v179 = vlaneseq
    %v180 = vand.u32 %v179, 127
    %v181 = vmul.u32 %v175, 8
    %v182 = vmul.u32 %v176, 8
    %v183 = vadd.s32 %v181, %v178
    %v184 = vadd.s32 %v182, %v178
    %v185 = vmul.u32 %v183, 128
    %v186 = vmul.u32 %v184, 128
    %v187 = vadd.s32 %v185, %v180
    %v188 = vadd.s32 %v186, %v180
    %v189 = vshrl.u32 %v187, 16
    %v190 = vshrl.u32 %v188, 16
    %v191 = vxor.u32 %v187, %v189
    %v192 = vxor.u32 %v188, %v190
    %v193 = vmul.u32 %v191, 2246822507
    %v194 = vmul.u32 %v192, 2246822507
    %v195 = vshrl.u32 %v193, 13
    %v196 = vshrl.u32 %v194, 13
    %v197 = vxor.u32 %v193, %v195
    %v198 = vxor.u32 %v194, %v196
    %v199 = vmul.u32 %v197, 3266489909
    %v200 = vmul.u32 %v198, 3266489909
    %v201 = vshrl.u32 %v199, 16
    %v202 = vshrl.u32 %v200, 16
    %v203 = vxor.u32 %v199, %v201
    %v204 = vxor.u32 %v200, %v202
    %vm205 = vcmp.ge.u32.totalorder %v203, 2147483648
    %vm206 = vcmp.ge.u32.totalorder %v204, 2147483648
    %v207 = vsel %vm205, %v167, 0.0
    %v208 = vsel %vm206, %v169, 0.0
    %v209 = vpack.c.bf16 %v207, %v207
    %v210 = vpack.c.bf16 %v208, %v208
    %v211 = vld [vmem:[#allocation7] sm:$0xff]
    %v212 = vld [vmem:[#allocation7 + $0x8] sm:$0xff]
    %v213 = vld [vmem:[#allocation7 + $0x10] sm:$0xff]
    %v214 = vld [vmem:[#allocation7 + $0x18] sm:$0xff]
    %v215 = vld [vmem:[#allocation7 + $0x20] sm:$0xff]
    %v216 = vld [vmem:[#allocation7 + $0x28] sm:$0xff]
    %v217 = vld [vmem:[#allocation7 + $0x30] sm:$0xff]
    %v218 = vld [vmem:[#allocation7 + $0x38] sm:$0xff]
    %v219 = vld [vmem:[#allocation7 + $0x40] sm:$0xff]
    %v220 = vld [vmem:[#allocation7 + $0x48] sm:$0xff]
    %v221 = vld [vmem:[#allocation7 + $0x50] sm:$0xff]
    %v222 = vld [vmem:[#allocation7 + $0x58] sm:$0xff]
    %v223 = vld [vmem:[#allocation7 + $0x60] sm:$0xff]
    %v224 = vld [vmem:[#allocation7 + $0x68] sm:$0xff]
    %v225 = vld [vmem:[#allocation7 + $0x70] sm:$0xff]
    %v226 = vld [vmem:[#allocation7 + $0x78] sm:$0xff]
    %v227 = vld [vmem:[#allocation7 + $0x80] sm:$0xff]
    %v228 = vld [vmem:[#allocation7 + $0x88] sm:$0xff]
    %v229 = vld [vmem:[#allocation7 + $0x90] sm:$0xff]
    %v230 = vld [vmem:[#allocation7 + $0x98] sm:$0xff]
    %v231 = vld [vmem:[#allocation7 + $0xa0] sm:$0xff]
    %v232 = vld [vmem:[#allocation7 + $0xa8] sm:$0xff]
    %v233 = vld [vmem:[#allocation7 + $0xb0] sm:$0xff]
    %v234 = vld [vmem:[#allocation7 + $0xb8] sm:$0xff]
    %v235 = vld [vmem:[#allocation7 + $0xc0] sm:$0xff]
    %v236 = vld [vmem:[#allocation7 + $0xc8] sm:$0xff]
    %v237 = vld [vmem:[#allocation7 + $0xd0] sm:$0xff]
    %v238 = vld [vmem:[#allocation7 + $0xd8] sm:$0xff]
    %v239 = vld [vmem:[#allocation7 + $0xe0] sm:$0xff]
    %v240 = vld [vmem:[#allocation7 + $0xe8] sm:$0xff]
    %v241 = vld [vmem:[#allocation7 + $0xf0] sm:$0xff]
    %v242 = vld [vmem:[#allocation7 + $0xf8] sm:$0xff]
    %v243 = vpack.c.bf16 %v212, %v211
    %v244 = vpack.c.bf16 %v214, %v213
    %v245 = vpack.c.bf16 %v216, %v215
    %v246 = vpack.c.bf16 %v218, %v217
    %v247 = vpack.c.bf16 %v220, %v219
    %v248 = vpack.c.bf16 %v222, %v221
    %v249 = vpack.c.bf16 %v224, %v223
    %v250 = vpack.c.bf16 %v226, %v225
    %v251 = vpack.c.bf16 %v228, %v227
    %v252 = vpack.c.bf16 %v230, %v229
    %v253 = vpack.c.bf16 %v232, %v231
    %v254 = vpack.c.bf16 %v234, %v233
    %v255 = vpack.c.bf16 %v236, %v235
    %v256 = vpack.c.bf16 %v238, %v237
    %v257 = vpack.c.bf16 %v240, %v239
    %v258 = vpack.c.bf16 %v242, %v241
    %259 = vmatprep.subr.bf16.mxu0 0
    %260 = vmatpush1.bf16.msra.mxu0 %v250
    %261 = vmatprep.subr.bf16.mxu0 0
    %262 = vmatpush1.bf16.msra.mxu0 %v249
    %263 = vmatprep.subr.bf16.mxu0 0
    %264 = vmatpush1.bf16.msra.mxu0 %v248
    %265 = vmatprep.subr.bf16.mxu0 0
    %266 = vmatpush1.bf16.msra.mxu0 %v247
    %267 = vmatprep.subr.bf16.mxu0 0
    %268 = vmatpush1.bf16.msra.mxu0 %v246
    %269 = vmatprep.subr.bf16.mxu0 0
    %270 = vmatpush1.bf16.msra.mxu0 %v245
    %271 = vmatprep.subr.bf16.mxu0 0
    %272 = vmatpush1.bf16.msra.mxu0 %v244
    %273 = vmatprep.subr.bf16.mxu0 0
    %274 = vmatpush1.bf16.msra.mxu0 %v243
    %275 = vmatprep.subr.bf16.mxu0 0
    %276 = vmatpush2.bf16.msra.mxu0 0
    %277 = vmatprep.subr.bf16.mxu0 0
    %278 = vmatpush2.bf16.msra.mxu0 0
    %279 = vmatprep.subr.bf16.mxu0 0
    %280 = vmatpush2.bf16.msra.mxu0 0
    %281 = vmatprep.subr.bf16.mxu0 0
    %282 = vmatpush2.bf16.msra.mxu0 0
    %283 = vmatprep.subr.bf16.mxu0 0
    %284 = vmatpush2.bf16.msra.mxu0 0
    %285 = vmatprep.subr.bf16.mxu0 0
    %286 = vmatpush2.bf16.msra.mxu0 0
    %287 = vmatprep.subr.bf16.mxu0 0
    %288 = vmatpush2.bf16.msra.mxu0 0
    %289 = vmatprep.subr.bf16.mxu0 0
    %290 = vmatpush2.bf16.msra.mxu0 0
    %291 = vmatprep.mubr.bf16.mxu0 0
    %292 = vmatmul.mubr.bf16.gmra.mxu0 %v209
    %v293 = vpop.f32.mrf.mxu0
    %v294 = vadd.f32 0.0, %v293
    %v295 = vpop.f32.mrf.mxu0
    %v296 = vpop.f32.mrf.mxu0
    %v297 = vpop.f32.mrf.mxu0
    %298 = vdwg.mxu0
    %299 = vmatprep.subr.bf16.mxu0 0
    %300 = vmatpush1.bf16.msra.mxu0 %v258
    %301 = vmatprep.subr.bf16.mxu0 0
    %302 = vmatpush1.bf16.msra.mxu0 %v257
    %303 = vmatprep.subr.bf16.mxu0 0
    %304 = vmatpush1.bf16.msra.mxu0 %v256
    %305 = vmatprep.subr.bf16.mxu0 0
    %306 = vmatpush1.bf16.msra.mxu0 %v255
    %307 = vmatprep.subr.bf16.mxu0 0
    %308 = vmatpush1.bf16.msra.mxu0 %v254
    %309 = vmatprep.subr.bf16.mxu0 0
    %310 = vmatpush1.bf16.msra.mxu0 %v253
    %311 = vmatprep.subr.bf16.mxu0 0
    %312 = vmatpush1.bf16.msra.mxu0 %v252
    %313 = vmatprep.subr.bf16.mxu0 0
    %314 = vmatpush1.bf16.msra.mxu0 %v251
    %315 = vmatprep.subr.bf16.mxu0 0
    %316 = vmatpush2.bf16.msra.mxu0 0
    %317 = vmatprep.subr.bf16.mxu0 0
    %318 = vmatpush2.bf16.msra.mxu0 0
    %319 = vmatprep.subr.bf16.mxu0 0
    %320 = vmatpush2.bf16.msra.mxu0 0
    %321 = vmatprep.subr.bf16.mxu0 0
    %322 = vmatpush2.bf16.msra.mxu0 0
    %323 = vmatprep.subr.bf16.mxu0 0
    %324 = vmatpush2.bf16.msra.mxu0 0
    %325 = vmatprep.subr.bf16.mxu0 0
    %326 = vmatpush2.bf16.msra.mxu0 0
    %327 = vmatprep.subr.bf16.mxu0 0
    %328 = vmatpush2.bf16.msra.mxu0 0
    %329 = vmatprep.subr.bf16.mxu0 0
    %330 = vmatpush2.bf16.msra.mxu0 0
    %331 = vmatprep.mubr.bf16.mxu0 0
    %332 = vmatmul.mubr.bf16.gmra.mxu0 %v210
    %v333 = vpop.f32.mrf.mxu0
    %v334 = vadd.f32 0.0, %v333
    %v335 = vpop.f32.mrf.mxu0
    %v336 = vpop.f32.mrf.mxu0
    %v337 = vpop.f32.mrf.mxu0
    %338 = vdwg.mxu0
    %v339 = vrcp.pop %v171
    %v340 = vrcp.pop %v173
    %v341 = vmul.f32 %v339, 2.0
    %v342 = vmul.f32 %v340, 2.0
    %v343 = vmul.f32 %v294, %v341
    %v344 = vmul.f32 %v334, %v342
    %345 = vst [vmem:[#allocation8] sm:$0xff] %v343
    %346 = vst [vmem:[#allocation8 + $0x8] sm:$0xff] %v344
    // Predicated region
    $region26: #{tpu_custom_call.1} parent=1 // pred_check
      _
    $region27: #{tpu_custom_call.1} parent=1 // pred_check_branch
      %348 = sbr.rel (0) target = $region29
    $region28: #{tpu_custom_call.1} parent=1 // pred_region
      %s350 = ssub.s32 256, 256
      %351 = vsyncadd [#allocation4], %s350
      %s352 = sshll.u32 [#allocation8], 4
      %s353 = int_to_ptr.vmem [resolvable:$true] %s352
      %358 = dma.vmem_to_hbm [thread:$0]  %s353, 256, %s3, [#allocation4], 128, 128, 8
    $region29: #{tpu_custom_call.1} parent=1 // pred_fallthru
      _
    // Predicated region
    $region30: #{tpu_custom_call.1} parent=1 // pred_check
      _
    $region31: #{tpu_custom_call.1} parent=1 // pred_check_branch
      %360 = sbr.rel (0) target = $region33
    $region32: #{tpu_custom_call.1} parent=1 // pred_region
      %361 = dma.done [#allocation4], 256
    $region33: #{tpu_custom_call.1} parent=1 // pred_fallthru
      _
    %362 = vsyncpa [#allocation3], 1
    %363 = vsyncpa [#allocation6], 1
    %364 = vsyncpa [#allocation4], 1

</llo_original>
